<compile_context>
chip_gen: v7x
topology: tpu7x:2x2x1
jax: 0.10.0
libtpu: 0.0.40
codegen_flags: <defaults>
</compile_context>

<pallas_src>
import functools

import jax
import jax.numpy as jnp
from jax.experimental import pallas as pl
from jax.experimental.pallas import tpu as pltpu


def _round_up(v, mult):
    return ((v + mult - 1) // mult) * mult


def _amsoftmax_kernel(x_ref, w_ref, lb_ref, costh_ref, loss_ref,
                      xn_ref, m_sc, l_sc, corr_sc,
                      *, m, s, bn_eps, n_rows, n_classes):
    ci = pl.program_id(0)
    n_ci = pl.num_programs(0)
    b_pad = x_ref.shape[0]
    tile_c = w_ref.shape[1]
    neg_big = jnp.float32(-1e30)   # finite "-inf" (avoids inf*0 NaNs)

    # ---- first C tile: batch-norm x once into scratch, init online-LSE -----
    @pl.when(ci == 0)
    def _init():
        x = x_ref[...].astype(jnp.float32)                        # (Bp, Fp)
        row_ids = jax.lax.broadcasted_iota(jnp.int32, (b_pad, 1), 0)
        row_mask = (row_ids < n_rows).astype(jnp.float32)         # mask B pad
        inv_n = jnp.float32(1.0 / n_rows)
        mean = jnp.sum(x, axis=0, keepdims=True) * inv_n          # pad rows = 0
        xc = x - mean                                             # reused
        var = jnp.sum(xc * xc * row_mask, axis=0, keepdims=True) * inv_n  # biased
        xn_ref[...] = (xc * jax.lax.rsqrt(var + bn_eps)).astype(xn_ref.dtype)
        m_sc[...] = jnp.full_like(m_sc, neg_big)
        l_sc[...] = jnp.zeros_like(l_sc)
        corr_sc[...] = jnp.zeros_like(corr_sc)

    # ---- per C tile: column-normalize W, cosine logits on the MXU ----------
    w = w_ref[...].astype(jnp.float32)                            # (Fp, Tc)
    # 1/max(||w||, 1e-12) == rsqrt(max(sum(w^2), 1e-24)) : EUP rsqrt, no divide.
    inv_norm = jax.lax.rsqrt(jnp.maximum(jnp.sum(w * w, axis=0, keepdims=True),
                                         1e-24))
    w_n = w * inv_norm
    costh = jnp.dot(xn_ref[...], w_n.astype(xn_ref.dtype),
                    preferred_element_type=jnp.float32)           # (Bp, Tc)
    costh_ref[...] = costh.astype(costh_ref.dtype)

    # ---- additive margin + scale, online logsumexp across C tiles ----------
    class_ids = ci * tile_c + jax.lax.broadcasted_iota(
        jnp.int32, (b_pad, tile_c), 1)
    onehot = (class_ids == lb_ref[...]).astype(jnp.float32)
    logits = s * (costh - m * onehot)
    logits = jnp.where(class_ids < n_classes, logits, neg_big)    # mask C pad

    m_new = jnp.maximum(m_sc[...], jnp.max(logits, axis=1, keepdims=True))
    alpha = jnp.exp(m_sc[...] - m_new)
    l_sc[...] = alpha * l_sc[...] + jnp.sum(jnp.exp(logits - m_new),
                                            axis=1, keepdims=True)
    corr_sc[...] = corr_sc[...] + jnp.sum(logits * onehot, axis=1, keepdims=True)
    m_sc[...] = m_new

    # ---- last C tile: finalize mean cross-entropy ---------------------------
    @pl.when(ci == n_ci - 1)
    def _finalize():
        per_row = m_sc[...] + jnp.log(l_sc[...]) - corr_sc[...]   # (Bp, 1)
        row_ids = jax.lax.broadcasted_iota(jnp.int32, (b_pad, 1), 0)
        per_row = jnp.where(row_ids < n_rows, per_row, 0.0)
        loss = jnp.sum(per_row) * jnp.float32(1.0 / n_rows)
        loss_ref[...] = jnp.reshape(loss, (1, 1)).astype(loss_ref.dtype)


def amsoftmax_forward(x, W, lb, *, m=0.35, s=30.0, bn_eps=1e-5,
                      block_c=512, mxu_dtype=jnp.bfloat16):
    """Pallas AMSoftmax forward. Returns (costh, loss)."""
    B, F = x.shape
    F2, C = W.shape
    assert F == F2

    b_pad = _round_up(B, 8)                                   # sublanes
    f_pad = _round_up(F, 128)                                 # lanes (matmul K)
    tile_c = min(_round_up(block_c, 128), _round_up(C, 128))  # lane-dense C tile
    c_pad = _round_up(C, tile_c)
    n_c_tiles = c_pad // tile_c

    # Zero-pad in the ORIGINAL dtype (no wrapper f32 up-cast).
    x_p = jnp.pad(x, ((0, b_pad - B), (0, f_pad - F)))
    w_p = jnp.pad(W, ((0, f_pad - F), (0, c_pad - C)))
    lb_p = jnp.pad(lb.astype(jnp.int32).reshape(B, 1), ((0, b_pad - B), (0, 0)))

    kernel = functools.partial(_amsoftmax_kernel, m=float(m), s=float(s),
                               bn_eps=float(bn_eps), n_rows=B, n_classes=C)

    grid_spec = pltpu.PrefetchScalarGridSpec(
        num_scalar_prefetch=0,
        grid=(n_c_tiles,),
        in_specs=[
            pl.BlockSpec((b_pad, f_pad), lambda ci: (0, 0)),      # x (resident)
            pl.BlockSpec((f_pad, tile_c), lambda ci: (0, ci)),    # W C-tile
            pl.BlockSpec((b_pad, 1), lambda ci: (0, 0)),          # labels
        ],
        out_specs=(
            pl.BlockSpec((b_pad, tile_c), lambda ci: (0, ci)),    # costh C-tile
            pl.BlockSpec((1, 1), lambda ci: (0, 0)),              # scalar loss
        ),
        scratch_shapes=[
            pltpu.VMEM((b_pad, f_pad), mxu_dtype),  # batch-normed x (MXU dtype)
            pltpu.VMEM((b_pad, 1), jnp.float32),    # running row max
            pltpu.VMEM((b_pad, 1), jnp.float32),    # running row sum-exp
            pltpu.VMEM((b_pad, 1), jnp.float32),    # correct-class logit
        ],
    )

    costh_p, loss = pl.pallas_call(
        kernel,
        out_shape=(
            jax.ShapeDtypeStruct((b_pad, c_pad), jnp.float32),
            jax.ShapeDtypeStruct((1, 1), jnp.float32),
        ),
        grid_spec=grid_spec,
        compiler_params=pltpu.CompilerParams(
            # The C axis carries the online-LSE reduction -> "arbitrary".
            # (A megacore-parallel B axis would need two-pass batch-norm
            #  statistics + partial-loss accumulation; kept single-core here.)
            dimension_semantics=("arbitrary",),
            vmem_limit_bytes=32 * 1024 * 1024,  # lift v5e's 16 MiB scoped default
        ),
    )(x_p, w_p, lb_p)

    return costh_p[:B, :C], loss[0, 0]


def _reference(x, W, lb, *, m=0.35, s=30.0, bn_eps=1e-5, mxu_dtype=jnp.float32):
    """Pure-JAX reference matching the PyTorch module's forward."""
    x = x.astype(jnp.float32)
    W = W.astype(jnp.float32)
    mean = jnp.mean(x, axis=0, keepdims=True)
    var = jnp.mean((x - mean) ** 2, axis=0, keepdims=True)
    x_n = (x - mean) / jnp.sqrt(var + bn_eps)
    w_n = W / jnp.maximum(jnp.linalg.norm(W, axis=0, keepdims=True), 1e-12)
    costh = jnp.dot(x_n.astype(mxu_dtype), w_n.astype(mxu_dtype),
                    preferred_element_type=jnp.float32)
    onehot = jax.nn.one_hot(lb, W.shape[1], dtype=jnp.float32)
    logits = s * (costh - m * onehot)
    lse = jax.scipy.special.logsumexp(logits, axis=1)
    correct = jnp.take_along_axis(logits, lb[:, None], axis=1)[:, 0]
    return costh, jnp.mean(lse - correct)


if __name__ == "__main__":
    B, in_feats, n_class = 8, 32, 16
    key = jax.random.PRNGKey(0)
    kx, kw, kl = jax.random.split(key, 3)

    x = jax.random.normal(kx, (B, in_feats), dtype=jnp.float32)
    # Xavier-normal init of W (gain=1): std = sqrt(2 / (fan_in + fan_out))
    std = (2.0 / (in_feats + n_class)) ** 0.5
    W = std * jax.random.normal(kw, (in_feats, n_class), dtype=jnp.float32)
    lb = jax.random.randint(kl, (B,), 0, n_class, dtype=jnp.int32)

    # Exact (f32 MXU operand) path: tight check against the reference.
    costh, loss = amsoftmax_forward(x, W, lb, mxu_dtype=jnp.float32)
    jax.block_until_ready((costh, loss))
    costh_ref, loss_ref = _reference(x, W, lb, mxu_dtype=jnp.float32)
    assert costh.shape == (B, n_class)
    assert jnp.allclose(costh, costh_ref, atol=1e-4, rtol=1e-4)
    assert jnp.allclose(loss, loss_ref, atol=1e-4, rtol=1e-4)

    # Default bf16-operand MXU path (v6e/v7x native): compare to a reference
    # that applies the same bf16 operand rounding (f32 accumulation in both).
    costh_bf, loss_bf = amsoftmax_forward(x, W, lb)
    jax.block_until_ready((costh_bf, loss_bf))
    costh_rbf, loss_rbf = _reference(x, W, lb, mxu_dtype=jnp.bfloat16)
    assert jnp.allclose(costh_bf, costh_rbf, atol=2e-3, rtol=2e-3)
    assert jnp.allclose(loss_bf, loss_rbf, atol=5e-2, rtol=1e-2)

    print("KERNEL_OK")
</pallas_src>

<mosaic_0001>
module attributes {stable_mosaic.version = 11 : i64} {
  func.func @_amsoftmax_kernel(%arg0: i32, %arg1: memref<8x128xf32, #tpu.memory_space<vmem>>, %arg2: memref<128x128xf32, #tpu.memory_space<vmem>>, %arg3: memref<8x1xi32, #tpu.memory_space<vmem>>, %arg4: memref<8x128xf32, #tpu.memory_space<vmem>>, %arg5: memref<1x1xf32, #tpu.memory_space<vmem>>, %arg6: memref<8x128xf32, #tpu.memory_space<vmem>>, %arg7: memref<8x1xf32, #tpu.memory_space<vmem>>, %arg8: memref<8x1xf32, #tpu.memory_space<vmem>>, %arg9: memref<8x1xf32, #tpu.memory_space<vmem>>) attributes {dimension_semantics = [#tpu.dimension_semantics<arbitrary>], iteration_bounds = array<i64: 1>, scalar_prefetch = 0 : i64, scratch_operands = 4 : i64, tpu.core_type = #tpu.core_type<tc>, window_params = [{pipeline_mode = #tpu.pipeline_mode<synchronous>, transform_indices = @transform_0, window_bounds = array<i64: 8, 128>}, {transform_indices = @transform_1, window_bounds = array<i64: 128, 128>}, {pipeline_mode = #tpu.pipeline_mode<synchronous>, transform_indices = @transform_2, window_bounds = array<i64: 8, 1>}, {transform_indices = @transform_3, window_bounds = array<i64: 8, 128>}, {pipeline_mode = #tpu.pipeline_mode<synchronous>, transform_indices = @transform_4, window_bounds = array<i64: 1, 1>}]} {
    %c0_i32 = arith.constant 0 : i32
    %0 = arith.cmpi eq, %arg0, %c0_i32 : i32
    %1 = arith.extui %0 : i1 to i32
    %cst = arith.constant -1.000000e+30 : f32
    %c0_i32_0 = arith.constant 0 : i32
    %2 = arith.cmpi ne, %1, %c0_i32_0 : i32
    scf.if %2 {
      %c0_33 = arith.constant 0 : index
      %c0_34 = arith.constant 0 : index
      %59 = vector.load %arg1[%c0_33, %c0_34] : memref<8x128xf32, #tpu.memory_space<vmem>>, vector<8x128xf32>
      %60 = tpu.iota {dimensions = array<i32: 0>} : vector<8x1xi32>
      %c8_i32 = arith.constant 8 : i32
      %61 = vector.broadcast %c8_i32 : i32 to vector<8x1xi32>
      %62 = arith.cmpi slt, %60, %61 : vector<8x1xi32>
      %63 = arith.extui %62 : vector<8x1xi1> to vector<8x1xi32>
      %64 = arith.sitofp %63 : vector<8x1xi32> to vector<8x1xf32>
      %cst_35 = arith.constant dense<0.000000e+00> : vector<128xf32>
      %65 = vector.multi_reduction <add>, %59, %cst_35 [0] : vector<8x128xf32> to vector<128xf32>
      %66 = vector.shape_cast %65 : vector<128xf32> to vector<1x128xf32>
      %cst_36 = arith.constant 1.250000e-01 : f32
      %67 = vector.broadcast %cst_36 : f32 to vector<1x128xf32>
      %68 = arith.mulf %66, %67 : vector<1x128xf32>
      %69 = vector.broadcast %68 : vector<1x128xf32> to vector<8x128xf32>
      %70 = arith.subf %59, %69 : vector<8x128xf32>
      %71 = arith.mulf %70, %70 : vector<8x128xf32>
      %72 = vector.broadcast %64 : vector<8x1xf32> to vector<8x128xf32>
      %73 = arith.mulf %71, %72 : vector<8x128xf32>
      %cst_37 = arith.constant dense<0.000000e+00> : vector<128xf32>
      %74 = vector.multi_reduction <add>, %73, %cst_37 [0] : vector<8x128xf32> to vector<128xf32>
      %75 = vector.shape_cast %74 : vector<128xf32> to vector<1x128xf32>
      %cst_38 = arith.constant 1.250000e-01 : f32
      %76 = vector.broadcast %cst_38 : f32 to vector<1x128xf32>
      %77 = arith.mulf %75, %76 : vector<1x128xf32>
      %cst_39 = arith.constant 9.99999974E-6 : f32
      %78 = vector.broadcast %cst_39 : f32 to vector<1x128xf32>
      %79 = arith.addf %77, %78 : vector<1x128xf32>
      %80 = math.rsqrt %79 : vector<1x128xf32>
      %81 = vector.broadcast %80 : vector<1x128xf32> to vector<8x128xf32>
      %82 = arith.mulf %70, %81 : vector<8x128xf32>
      %c0_40 = arith.constant 0 : index
      %c0_41 = arith.constant 0 : index
      %83 = vector.load %arg6[%c0_40, %c0_41] : memref<8x128xf32, #tpu.memory_space<vmem>>, vector<8x128xf32>
      tpu.vector_store %arg6[%c0_40, %c0_41], %82 {strides = array<i32>} : memref<8x128xf32, #tpu.memory_space<vmem>>, vector<8x128xf32>,
      %84 = vector.broadcast %cst : f32 to vector<8x1xf32>
      %c0_42 = arith.constant 0 : index
      %c0_43 = arith.constant 0 : index
      %85 = vector.load %arg7[%c0_42, %c0_43] : memref<8x1xf32, #tpu.memory_space<vmem>>, vector<8x1xf32>
      tpu.vector_store %arg7[%c0_42, %c0_43], %84 {strides = array<i32>} : memref<8x1xf32, #tpu.memory_space<vmem>>, vector<8x1xf32>,
      %cst_44 = arith.constant 0.000000e+00 : f32
      %86 = vector.broadcast %cst_44 : f32 to vector<8x1xf32>
      %c0_45 = arith.constant 0 : index
      %c0_46 = arith.constant 0 : index
      %87 = vector.load %arg8[%c0_45, %c0_46] : memref<8x1xf32, #tpu.memory_space<vmem>>, vector<8x1xf32>
      tpu.vector_store %arg8[%c0_45, %c0_46], %86 {strides = array<i32>} : memref<8x1xf32, #tpu.memory_space<vmem>>, vector<8x1xf32>,
      %cst_47 = arith.constant 0.000000e+00 : f32
      %88 = vector.broadcast %cst_47 : f32 to vector<8x1xf32>
      %c0_48 = arith.constant 0 : index
      %c0_49 = arith.constant 0 : index
      %89 = vector.load %arg9[%c0_48, %c0_49] : memref<8x1xf32, #tpu.memory_space<vmem>>, vector<8x1xf32>
      tpu.vector_store %arg9[%c0_48, %c0_49], %88 {strides = array<i32>} : memref<8x1xf32, #tpu.memory_space<vmem>>, vector<8x1xf32>,
    } else {
    }
    %c0 = arith.constant 0 : index
    %c0_1 = arith.constant 0 : index
    %3 = vector.load %arg2[%c0, %c0_1] : memref<128x128xf32, #tpu.memory_space<vmem>>, vector<128x128xf32>
    %4 = arith.mulf %3, %3 : vector<128x128xf32>
    %cst_2 = arith.constant dense<0.000000e+00> : vector<128xf32>
    %5 = vector.multi_reduction <add>, %4, %cst_2 [0] : vector<128x128xf32> to vector<128xf32>
    %6 = vector.shape_cast %5 : vector<128xf32> to vector<1x128xf32>
    %cst_3 = arith.constant 1.000000e-24 : f32
    %7 = vector.broadcast %cst_3 : f32 to vector<1x128xf32>
    %8 = arith.maximumf %6, %7 : vector<1x128xf32>
    %9 = math.rsqrt %8 : vector<1x128xf32>
    %10 = vector.broadcast %9 : vector<1x128xf32> to vector<128x128xf32>
    %11 = arith.mulf %3, %10 : vector<128x128xf32>
    %c0_4 = arith.constant 0 : index
    %c0_5 = arith.constant 0 : index
    %12 = vector.load %arg6[%c0_4, %c0_5] : memref<8x128xf32, #tpu.memory_space<vmem>>, vector<8x128xf32>
    %cst_6 = arith.constant dense<0.000000e+00> : vector<8x128xf32>
    %13 = tpu.matmul %12, %11, %cst_6 {dimension_numbers = #tpu.dot_dimension_numbers<[1], [0], [0], [1], [0, 0, 1, 1], [], []>} : vector<8x128xf32>, vector<128x128xf32>, vector<8x128xf32> -> vector<8x128xf32>
    %c0_7 = arith.constant 0 : index
    %c0_8 = arith.constant 0 : index
    %14 = vector.load %arg4[%c0_7, %c0_8] : memref<8x128xf32, #tpu.memory_space<vmem>>, vector<8x128xf32>
    tpu.vector_store %arg4[%c0_7, %c0_8], %13 {strides = array<i32>} : memref<8x128xf32, #tpu.memory_space<vmem>>, vector<8x128xf32>,
    %c128_i32 = arith.constant 128 : i32
    %15 = arith.muli %arg0, %c128_i32 : i32
    %16 = tpu.iota {dimensions = array<i32: 1>} : vector<8x128xi32>
    %17 = vector.broadcast %15 : i32 to vector<8x128xi32>
    %18 = arith.addi %17, %16 : vector<8x128xi32>
    %c0_9 = arith.constant 0 : index
    %c0_10 = arith.constant 0 : index
    %19 = vector.load %arg3[%c0_9, %c0_10] : memref<8x1xi32, #tpu.memory_space<vmem>>, vector<8x1xi32>
    %20 = vector.broadcast %19 : vector<8x1xi32> to vector<8x128xi32>
    %21 = arith.cmpi eq, %18, %20 : vector<8x128xi32>
    %22 = arith.extui %21 : vector<8x128xi1> to vector<8x128xi32>
    %23 = arith.sitofp %22 : vector<8x128xi32> to vector<8x128xf32>
    %cst_11 = arith.constant 3.500000e-01 : f32
    %24 = vector.broadcast %cst_11 : f32 to vector<8x128xf32>
    %25 = arith.mulf %24, %23 : vector<8x128xf32>
    %26 = arith.subf %13, %25 : vector<8x128xf32>
    %cst_12 = arith.constant 3.000000e+01 : f32
    %27 = vector.broadcast %cst_12 : f32 to vector<8x128xf32>
    %28 = arith.mulf %27, %26 : vector<8x128xf32>
    %c16_i32 = arith.constant 16 : i32
    %29 = vector.broadcast %c16_i32 : i32 to vector<8x128xi32>
    %30 = arith.cmpi slt, %18, %29 : vector<8x128xi32>
    %cst_13 = arith.constant -1.000000e+30 : f32
    %31 = vector.broadcast %cst_13 : f32 to vector<8x128xf32>
    %32 = arith.select %30, %28, %31 : vector<8x128xi1>, vector<8x128xf32>
    %c0_14 = arith.constant 0 : index
    %c0_15 = arith.constant 0 : index
    %33 = vector.load %arg7[%c0_14, %c0_15] : memref<8x1xf32, #tpu.memory_space<vmem>>, vector<8x1xf32>
    %cst_16 = arith.constant dense<0xFF800000> : vector<8xf32>
    %34 = vector.multi_reduction <maximumf>, %32, %cst_16 [1] : vector<8x128xf32> to vector<8xf32>
    %35 = vector.shape_cast %34 : vector<8xf32> to vector<8x1xf32>
    %36 = arith.maximumf %33, %35 : vector<8x1xf32>
    %c0_17 = arith.constant 0 : index
    %c0_18 = arith.constant 0 : index
    %37 = vector.load %arg7[%c0_17, %c0_18] : memref<8x1xf32, #tpu.memory_space<vmem>>, vector<8x1xf32>
    %38 = arith.subf %37, %36 : vector<8x1xf32>
    %39 = math.exp %38 : vector<8x1xf32>
    %c0_19 = arith.constant 0 : index
    %c0_20 = arith.constant 0 : index
    %40 = vector.load %arg8[%c0_19, %c0_20] : memref<8x1xf32, #tpu.memory_space<vmem>>, vector<8x1xf32>
    %41 = arith.mulf %39, %40 : vector<8x1xf32>
    %42 = vector.broadcast %36 : vector<8x1xf32> to vector<8x128xf32>
    %43 = arith.subf %32, %42 : vector<8x128xf32>
    %44 = math.exp %43 : vector<8x128xf32>
    %cst_21 = arith.constant dense<0.000000e+00> : vector<8xf32>
    %45 = vector.multi_reduction <add>, %44, %cst_21 [1] : vector<8x128xf32> to vector<8xf32>
    %46 = vector.shape_cast %45 : vector<8xf32> to vector<8x1xf32>
    %47 = arith.addf %41, %46 : vector<8x1xf32>
    %c0_22 = arith.constant 0 : index
    %c0_23 = arith.constant 0 : index
    %48 = vector.load %arg8[%c0_22, %c0_23] : memref<8x1xf32, #tpu.memory_space<vmem>>, vector<8x1xf32>
    tpu.vector_store %arg8[%c0_22, %c0_23], %47 {strides = array<i32>} : memref<8x1xf32, #tpu.memory_space<vmem>>, vector<8x1xf32>,
    %c0_24 = arith.constant 0 : index
    %c0_25 = arith.constant 0 : index
    %49 = vector.load %arg9[%c0_24, %c0_25] : memref<8x1xf32, #tpu.memory_space<vmem>>, vector<8x1xf32>
    %50 = arith.mulf %32, %23 : vector<8x128xf32>
    %cst_26 = arith.constant dense<0.000000e+00> : vector<8xf32>
    %51 = vector.multi_reduction <add>, %50, %cst_26 [1] : vector<8x128xf32> to vector<8xf32>
    %52 = vector.shape_cast %51 : vector<8xf32> to vector<8x1xf32>
    %53 = arith.addf %49, %52 : vector<8x1xf32>
    %c0_27 = arith.constant 0 : index
    %c0_28 = arith.constant 0 : index
    %54 = vector.load %arg9[%c0_27, %c0_28] : memref<8x1xf32, #tpu.memory_space<vmem>>, vector<8x1xf32>
    tpu.vector_store %arg9[%c0_27, %c0_28], %53 {strides = array<i32>} : memref<8x1xf32, #tpu.memory_space<vmem>>, vector<8x1xf32>,
    %c0_29 = arith.constant 0 : index
    %c0_30 = arith.constant 0 : index
    %55 = vector.load %arg7[%c0_29, %c0_30] : memref<8x1xf32, #tpu.memory_space<vmem>>, vector<8x1xf32>
    tpu.vector_store %arg7[%c0_29, %c0_30], %36 {strides = array<i32>} : memref<8x1xf32, #tpu.memory_space<vmem>>, vector<8x1xf32>,
    %c0_i32_31 = arith.constant 0 : i32
    %56 = arith.cmpi eq, %arg0, %c0_i32_31 : i32
    %57 = arith.extui %56 : i1 to i32
    %c0_i32_32 = arith.constant 0 : i32
    %58 = arith.cmpi ne, %57, %c0_i32_32 : i32
    scf.if %58 {
      %c0_33 = arith.constant 0 : index
      %c0_34 = arith.constant 0 : index
      %59 = vector.load %arg7[%c0_33, %c0_34] : memref<8x1xf32, #tpu.memory_space<vmem>>, vector<8x1xf32>
      %c0_35 = arith.constant 0 : index
      %c0_36 = arith.constant 0 : index
      %60 = vector.load %arg8[%c0_35, %c0_36] : memref<8x1xf32, #tpu.memory_space<vmem>>, vector<8x1xf32>
      %61 = math.log %60 : vector<8x1xf32>
      %62 = arith.addf %59, %61 : vector<8x1xf32>
      %c0_37 = arith.constant 0 : index
      %c0_38 = arith.constant 0 : index
      %63 = vector.load %arg9[%c0_37, %c0_38] : memref<8x1xf32, #tpu.memory_space<vmem>>, vector<8x1xf32>
      %64 = arith.subf %62, %63 : vector<8x1xf32>
      %65 = tpu.iota {dimensions = array<i32: 0>} : vector<8x1xi32>
      %c8_i32 = arith.constant 8 : i32
      %66 = vector.broadcast %c8_i32 : i32 to vector<8x1xi32>
      %67 = arith.cmpi slt, %65, %66 : vector<8x1xi32>
      %cst_39 = arith.constant 0.000000e+00 : f32
      %68 = vector.broadcast %cst_39 : f32 to vector<8x1xf32>
      %69 = arith.select %67, %64, %68 : vector<8x1xi1>, vector<8x1xf32>
      %70 = vector.shape_cast %69 : vector<8x1xf32> to vector<1x8x1xf32>
      %cst_40 = arith.constant dense<0.000000e+00> : vector<1xf32>
      %71 = vector.multi_reduction <add>, %70, %cst_40 [1, 2] : vector<1x8x1xf32> to vector<1xf32>
      %72 = vector.shape_cast %71 : vector<1xf32> to vector<1x1x1xf32>
      %73 = vector.extract %72[0, 0, 0] : f32 from vector<1x1x1xf32>
      %cst_41 = arith.constant 1.250000e-01 : f32
      %74 = arith.mulf %73, %cst_41 : f32
      %75 = vector.broadcast %74 : f32 to vector<1x1xf32>
      %c0_42 = arith.constant 0 : index
      %c0_43 = arith.constant 0 : index
      %76 = vector.load %arg5[%c0_42, %c0_43] : memref<1x1xf32, #tpu.memory_space<vmem>>, vector<1x1xf32>
      tpu.vector_store %arg5[%c0_42, %c0_43], %75 {strides = array<i32>} : memref<1x1xf32, #tpu.memory_space<vmem>>, vector<1x1xf32>,
    } else {
    }
    return
  }
  func.func @transform_0(%arg0: i32) -> (i32, i32) {
    %c0_i32 = arith.constant 0 : i32
    %c0_i32_0 = arith.constant 0 : i32
    %c0_i32_1 = arith.constant 0 : i32
    return %c0_i32, %c0_i32_0 : i32, i32
  }
  func.func @transform_1(%arg0: i32) -> (i32, i32) {
    %c0_i32 = arith.constant 0 : i32
    %c0_i32_0 = arith.constant 0 : i32
    return %c0_i32, %arg0 : i32, i32
  }
  func.func @transform_2(%arg0: i32) -> (i32, i32) {
    %c0_i32 = arith.constant 0 : i32
    %c0_i32_0 = arith.constant 0 : i32
    %c0_i32_1 = arith.constant 0 : i32
    return %c0_i32, %c0_i32_0 : i32, i32
  }
  func.func @transform_3(%arg0: i32) -> (i32, i32) {
    %c0_i32 = arith.constant 0 : i32
    %c0_i32_0 = arith.constant 0 : i32
    return %c0_i32, %arg0 : i32, i32
  }
  func.func @transform_4(%arg0: i32) -> (i32, i32) {
    %c0_i32 = arith.constant 0 : i32
    %c0_i32_0 = arith.constant 0 : i32
    %c0_i32_1 = arith.constant 0 : i32
    return %c0_i32, %c0_i32_0 : i32, i32
  }
}

</mosaic_0001>

<llo_original>
// kernel: tpu_custom_call.1
$region0: #{tpu_custom_call.1}
  #allocation0 [shape = 'u32[]', space=smem, size = 0x4, offset = 0x4, fixed_abs, tag = 'smem constant byte address 0x4 - core index']
  #allocation1 [shape = 'u32[144,128]{1,0:T(1,128)}', space=vmem, size = 0x12000, scoped, tag = 'internal scratch']
  #allocation2 [shape = 'f32[8,128]{1,0:T(8,128)}', space=vmem, size = 0x1000, scoped, tag = 'scratch operand']
  #allocation3 [shape = 'f32[8,1]{1,0:T(8,128)}', space=vmem, size = 0x1000, scoped, tag = 'scratch operand']
  #allocation4 [shape = 'f32[8,1]{1,0:T(8,128)}', space=vmem, size = 0x1000, scoped, tag = 'scratch operand']
  #allocation5 [shape = 'f32[8,1]{1,0:T(8,128)}', space=vmem, size = 0x1000, scoped, tag = 'scratch operand']
  %s0 = inlined_call_operand.vmem [shape: f32[8,128], index: 0, kind: input, shape index: {}]
  %s1 = inlined_call_operand.hbm [shape: f32[128,128], index: 1, kind: input, shape index: {}]
  %s2 = inlined_call_operand.vmem [shape: s32[8,1], index: 2, kind: input, shape index: {}]
  %s3 = inlined_call_operand.hbm [shape: f32[8,128], index: 3, kind: output, shape index: {0}]
  %s4 = inlined_call_operand.hbm [shape: f32[1,1], index: 4, kind: output, shape index: {1}]
  %5 = xla_tuple %s3, %s4
  %s6 = sld [smem:[#allocation0]]
  $region42: #{tpu_custom_call.1} parent=0
    _
  %s8 = ssub.s32 1, %s6
  %s9 = scalar_select 0, %s8, %s6
  $region1: #{tpu_custom_call.1} parent=0
    #allocation6 [shape = 'u8[65536]{0}', space=vmem, size = 0x10000, scoped, tag = 'input window, operand 1, single buffered']
    #allocation7 [shape = 's32[1]{0}', space=sflag, size = 0x4, scoped, tag = 'scoped memory for tpu_custom_call.1']
    #allocation8 [shape = 's32[1]{0}', space=sflag, size = 0x4, scoped, tag = 'scoped memory for tpu_custom_call.1']
    #allocation9 [shape = 'u8[4096]{0}', space=vmem, size = 0x1000, scoped, tag = 'output window, operand 0, single buffered']
    #allocation10 [shape = 'u8[512]{0}', space=vmem, size = 0x400, scoped, tag = 'output window, operand 1, single buffered']
    #allocation11 [shape = 's32[1]{0}', space=sflag, size = 0x4, scoped, tag = 'scoped memory for tpu_custom_call.1']
    %10 = vsyncpa [#allocation7], 0
    %11 = vsyncpa [#allocation8], 0
    %12 = vsyncpa [#allocation11], 0
    // Predicated region
    $region2: #{tpu_custom_call.1} parent=1 // pred_check
      _
    $region3: #{tpu_custom_call.1} parent=1 // pred_check_branch
      %14 = sbr.rel (0) target = $region5
    $region4: #{tpu_custom_call.1} parent=1 // pred_region
      _
    $region5: #{tpu_custom_call.1} parent=1 // pred_fallthru
      _
    // Predicated region
    $region6: #{tpu_custom_call.1} parent=1 // pred_check
      _
    $region7: #{tpu_custom_call.1} parent=1 // pred_check_branch
      %16 = sbr.rel (0) target = $region9
    $region8: #{tpu_custom_call.1} parent=1 // pred_region
      %s18 = ssub.s32 2048, 2048
      %19 = vsyncadd [#allocation7], %s18
      %s20 = sshll.u32 [#allocation6], 4
      %s21 = int_to_ptr.vmem [resolvable:$true] %s20
      %26 = dma.hbm_to_vmem [thread:$0]  %s1, 2048, %s21, [#allocation7], 128, 128, 8
    $region9: #{tpu_custom_call.1} parent=1 // pred_fallthru
      _
    // Predicated region
    $region10: #{tpu_custom_call.1} parent=1 // pred_check
      _
    $region11: #{tpu_custom_call.1} parent=1 // pred_check_branch
      %28 = sbr.rel (0) target = $region13
    $region12: #{tpu_custom_call.1} parent=1 // pred_region
      _
    $region13: #{tpu_custom_call.1} parent=1 // pred_fallthru
      _
    // Predicated region
    $region14: #{tpu_custom_call.1} parent=1 // pred_check
      _
    $region15: #{tpu_custom_call.1} parent=1 // pred_check_branch
      %30 = sbr.rel (0) target = $region17
    $region16: #{tpu_custom_call.1} parent=1 // pred_region
      %31 = dma.done [#allocation7], 2048
    $region17: #{tpu_custom_call.1} parent=1 // pred_fallthru
      _
    %p32 = scmp.eq.s32.totalorder 0, 0
    // Predicated region
    $region18: #{tpu_custom_call.1} parent=1 // pred_check
      %p33 = pneg %p32
    $region19: #{tpu_custom_call.1} parent=1 // pred_check_branch
      %35 = sbr.rel (%p33) target = $region21
    $region20: #{tpu_custom_call.1} parent=1 // pred_region
      %v36 = vld [vmem:[%s0] sm:$0xff]
      %v37 = vlaneseq
      %v38 = vshrl.u32 %v37, 7
      %vm39 = vcmp.lt.s32.totalorder %v38, 8
      %v40 = vsel %vm39, 1, 0
      %v41 = vcvt.s32.f32 %v40
      %v42 = vrot.slane %v36, 4
      %v43 = vadd.f32 %v36, %v42
      %v44 = vrot.slane %v43, 2
      %v45 = vadd.f32 %v43, %v44
      %v46 = vrot.slane %v45, 1
      %v47 = vadd.f32 %v45, %v46
      %v48 = vmul.f32 %v47, 0.125
      %v49 = vsub.f32 %v36, %v48
      %v50 = vmul.f32 %v49, %v49
      %v51 = vmul.f32 %v50, %v41
      %v52 = vrot.slane %v51, 4
      %v53 = vadd.f32 %v51, %v52
      %v54 = vrot.slane %v53, 2
      %v55 = vadd.f32 %v53, %v54
      %v56 = vrot.slane %v55, 1
      %v57 = vadd.f32 %v55, %v56
      %v58 = vmul.f32 %v57, 0.125
      %v59 = vadd.f32 %v58, 1e-05
      %v60 = vrsqrt.pop %v59
      %v61 = vmul.f32 %v49, %v60
      %62 = vst [vmem:[#allocation2] sm:$0xff] %v61
      %vm63 = vcmask 7168
      %64 = vst.msk [vmem:[#allocation3] sm:$0xff] %vm63, -1e+30
      %65 = vst.msk [vmem:[#allocation4] sm:$0xff] %vm63, 0.0
      %66 = vst.msk [vmem:[#allocation5] sm:$0xff] %vm63, 0.0
    $region21: #{tpu_custom_call.1} parent=1 // pred_fallthru
      _
    %v67 = vld [vmem:[#allocation6] sm:$0xff]
    %v68 = vld [vmem:[#allocation6 + $0x8] sm:$0xff]
    %v69 = vld [vmem:[#allocation6 + $0x10] sm:$0xff]
    %v70 = vld [vmem:[#allocation6 + $0x18] sm:$0xff]
    %v71 = vld [vmem:[#allocation6 + $0x20] sm:$0xff]
    %v72 = vld [vmem:[#allocation6 + $0x28] sm:$0xff]
    %v73 = vld [vmem:[#allocation6 + $0x30] sm:$0xff]
    %v74 = vld [vmem:[#allocation6 + $0x38] sm:$0xff]
    %v75 = vld [vmem:[#allocation6 + $0x40] sm:$0xff]
    %v76 = vld [vmem:[#allocation6 + $0x48] sm:$0xff]
    %v77 = vld [vmem:[#allocation6 + $0x50] sm:$0xff]
    %v78 = vld [vmem:[#allocation6 + $0x58] sm:$0xff]
    %v79 = vld [vmem:[#allocation6 + $0x60] sm:$0xff]
    %v80 = vld [vmem:[#allocation6 + $0x68] sm:$0xff]
    %v81 = vld [vmem:[#allocation6 + $0x70] sm:$0xff]
    %v82 = vld [vmem:[#allocation6 + $0x78] sm:$0xff]
    %v83 = vmul.f32 %v67, %v67
    %v84 = vmul.f32 %v68, %v68
    %v85 = vmul.f32 %v69, %v69
    %v86 = vmul.f32 %v70, %v70
    %v87 = vmul.f32 %v71, %v71
    %v88 = vmul.f32 %v72, %v72
    %v89 = vmul.f32 %v73, %v73
    %v90 = vmul.f32 %v74, %v74
    %v91 = vmul.f32 %v75, %v75
    %v92 = vmul.f32 %v76, %v76
    %v93 = vmul.f32 %v77, %v77
    %v94 = vmul.f32 %v78, %v78
    %v95 = vmul.f32 %v79, %v79
    %v96 = vmul.f32 %v80, %v80
    %v97 = vmul.f32 %v81, %v81
    %v98 = vmul.f32 %v82, %v82
    %v99 = vadd.f32 %v83, %v84
    %v100 = vadd.f32 %v99, %v85
    %v101 = vadd.f32 %v100, %v86
    %v102 = vadd.f32 %v101, %v87
    %v103 = vadd.f32 %v102, %v88
    %v104 = vadd.f32 %v103, %v89
    %v105 = vadd.f32 %v104, %v90
    %v106 = vadd.f32 %v105, %v91
    %v107 = vadd.f32 %v106, %v92
    %v108 = vadd.f32 %v107, %v93
    %v109 = vadd.f32 %v108, %v94
    %v110 = vadd.f32 %v109, %v95
    %v111 = vadd.f32 %v110, %v96
    %v112 = vadd.f32 %v111, %v97
    %v113 = vadd.f32 %v112, %v98
    %v114 = vrot.slane %v113, 4
    %v115 = vadd.f32 %v113, %v114
    %v116 = vrot.slane %v115, 2
    %v117 = vadd.f32 %v115, %v116
    %v118 = vrot.slane %v117, 1
    %v119 = vadd.f32 %v117, %v118
    %v120 = vmax.f32 %v119, 1e-24
    %v121 = vrsqrt.pop %v120
    %v122 = vmul.f32 %v67, %v121
    %v123 = vmul.f32 %v68, %v121
    %v124 = vmul.f32 %v69, %v121
    %v125 = vmul.f32 %v70, %v121
    %v126 = vmul.f32 %v71, %v121
    %v127 = vmul.f32 %v72, %v121
    %v128 = vmul.f32 %v73, %v121
    %v129 = vmul.f32 %v74, %v121
    %v130 = vmul.f32 %v75, %v121
    %v131 = vmul.f32 %v76, %v121
    %v132 = vmul.f32 %v77, %v121
    %v133 = vmul.f32 %v78, %v121
    %v134 = vmul.f32 %v79, %v121
    %v135 = vmul.f32 %v80, %v121
    %v136 = vmul.f32 %v81, %v121
    %v137 = vmul.f32 %v82, %v121
    %v138 = vld [vmem:[#allocation2] sm:$0xff]
    %139 = vmatprep.subr.mxu0 0.0
    %140 = vmatpush1.msra.mxu0 %v122
    %141 = vmatprep.subr.mxu0 0.0
    %142 = vmatpush1.msra.mxu0 %v123
    %143 = vmatprep.subr.mxu0 0.0
    %144 = vmatpush1.msra.mxu0 %v124
    %145 = vmatprep.subr.mxu0 0.0
    %146 = vmatpush1.msra.mxu0 %v125
    %147 = vmatprep.subr.mxu0 0.0
    %148 = vmatpush1.msra.mxu0 %v126
    %149 = vmatprep.subr.mxu0 0.0
    %150 = vmatpush1.msra.mxu0 %v127
    %151 = vmatprep.subr.mxu0 0.0
    %152 = vmatpush1.msra.mxu0 %v128
    %153 = vmatprep.subr.mxu0 0.0
    %154 = vmatpush1.msra.mxu0 %v129
    %155 = vmatprep.subr.mxu0 0.0
    %156 = vmatpush1.msra.mxu0 %v130
    %157 = vmatprep.subr.mxu0 0.0
    %158 = vmatpush1.msra.mxu0 %v131
    %159 = vmatprep.subr.mxu0 0.0
    %160 = vmatpush1.msra.mxu0 %v132
    %161 = vmatprep.subr.mxu0 0.0
    %162 = vmatpush1.msra.mxu0 %v133
    %163 = vmatprep.subr.mxu0 0.0
    %164 = vmatpush1.msra.mxu0 %v134
    %165 = vmatprep.subr.mxu0 0.0
    %166 = vmatpush1.msra.mxu0 %v135
    %167 = vmatprep.subr.mxu0 0.0
    %168 = vmatpush1.msra.mxu0 %v136
    %169 = vmatprep.subr.mxu0 0.0
    %170 = vmatpush1.msra.mxu0 %v137
    %171 = vmatprep.subr.mxu0 0.0
    %172 = vmatpush1.msra.mxu0 0.0
    %173 = vmatprep.subr.mxu0 0.0
    %174 = vmatpush1.msra.mxu0 0.0
    %175 = vmatprep.subr.mxu0 0.0
    %176 = vmatpush1.msra.mxu0 0.0
    %177 = vmatprep.subr.mxu0 0.0
    %178 = vmatpush1.msra.mxu0 0.0
    %179 = vmatprep.subr.mxu0 0.0
    %180 = vmatpush1.msra.mxu0 0.0
    %181 = vmatprep.subr.mxu0 0.0
    %182 = vmatpush1.msra.mxu0 0.0
    %183 = vmatprep.subr.mxu0 0.0
    %184 = vmatpush1.msra.mxu0 0.0
    %185 = vmatprep.subr.mxu0 0.0
    %186 = vmatpush1.msra.mxu0 0.0
    %187 = vmatprep.subr.mxu0 0.0
    %188 = vmatpush1.msra.mxu0 0.0
    %189 = vmatprep.subr.mxu0 0.0
    %190 = vmatpush1.msra.mxu0 0.0
    %191 = vmatprep.subr.mxu0 0.0
    %192 = vmatpush1.msra.mxu0 0.0
    %193 = vmatprep.subr.mxu0 0.0
    %194 = vmatpush1.msra.mxu0 0.0
    %195 = vmatprep.subr.mxu0 0.0
    %196 = vmatpush1.msra.mxu0 0.0
    %197 = vmatprep.subr.mxu0 0.0
    %198 = vmatpush1.msra.mxu0 0.0
    %199 = vmatprep.subr.mxu0 0.0
    %200 = vmatpush1.msra.mxu0 0.0
    %201 = vmatprep.subr.mxu0 0.0
    %202 = vmatpush1.msra.mxu0 0.0
    %203 = vmatprep.mubr.f32.mxu0 0.0
    %204 = vmatmul.mubr.f32.gmra.mrb[0].mxu0 %v138
    %v205 = vpop.f32.mrb[0].mxu0
    %v206 = vadd.f32 0.0, %v205
    %v207 = vpop.f32.mrb[0].mxu0
    %208 = vdwg.mxu0
    %209 = vst [vmem:[#allocation9] sm:$0xff] %v206
    %s210 = smul.u32 0, 128
    %v211 = vlaneseq
    %v212 = vand.u32 %v211, 127
    %v213 = vstv %s210
    %v214 = vadd.s32 %v213, %v212
    %v215 = vld [vmem:[%s2] sm:$0xff]
    %216 = vset.pattern.permute.xlu0 0
    %217 = vperm.xlu0 %216, %v215
    %v218 = vpop.permute.xlu0 %217
    %vm219 = vcmp.eq.s32.totalorder %v214, %v218
    %v220 = vsel %vm219, 1, 0
    %v221 = vcvt.s32.f32 %v220
    %v222 = vmul.f32 %v221, 0.35
    %v223 = vsub.f32 %v206, %v222
    %v224 = vmul.f32 %v223, 30.0
    %vm225 = vcmp.lt.s32.totalorder %v214, 16
    %v226 = vsel %vm225, %v224, -1e+30
    %v227 = vld [vmem:[#allocation3] sm:$0xff]
    %228 = vmax.xlane.f32.xlu0 %v226
    %v229 = vpop.xlane.xlu0 %228
    %v230 = vmax.f32 %v227, %v229
    %v231 = vsub.f32 %v227, %v230
    %v232 = vmul.f32 %v231, 1.442695
    %v233 = vpow.pop %v232
    %v234 = vld [vmem:[#allocation4] sm:$0xff]
    %v235 = vmul.f32 %v233, %v234
    %237 = vset.pattern.permute.xlu0 0
    %238 = vperm.xlu0 %237, %v230
    %v239 = vpop.permute.xlu0 %238
    %v241 = vsub.f32 %v226, %v239
    %v242 = vmul.f32 %v241, 1.442695
    %v243 = vpow.pop %v242
    %244 = vadd.xlane.f32.xlu0 %v243
    %v245 = vpop.xlane.xlu0 %244
    %v246 = vadd.f32 %v235, %v245
    %vm247 = vcmask 7168
    %248 = vst.msk [vmem:[#allocation4] sm:$0xff] %vm247, %v246
    %v249 = vld [vmem:[#allocation5] sm:$0xff]
    %v250 = vmul.f32 %v226, %v221
    %251 = vadd.xlane.f32.xlu0 %v250
    %v252 = vpop.xlane.xlu0 %251
    %v253 = vadd.f32 %v249, %v252
    %254 = vst.msk [vmem:[#allocation5] sm:$0xff] %vm247, %v253
    %255 = vst.msk [vmem:[#allocation3] sm:$0xff] %vm247, %v230
    // Predicated region
    $region22: #{tpu_custom_call.1} parent=1 // pred_check
      %p256 = pneg %p32
    $region23: #{tpu_custom_call.1} parent=1 // pred_check_branch
      %258 = sbr.rel (%p256) target = $region25
    $region24: #{tpu_custom_call.1} parent=1 // pred_region
      %v259 = vld [vmem:[#allocation3] sm:$0xff]
      %v260 = vld [vmem:[#allocation4] sm:$0xff]
      %v261 = vlog2.pop %v260
      %v262 = vmul.f32 %v261, 0.6931472
      %v263 = vadd.f32 %v259, %v262
      %v264 = vld [vmem:[#allocation5] sm:$0xff]
      %v265 = vsub.f32 %v263, %v264
      %v266 = vlaneseq
      %v267 = vshrl.u32 %v266, 7
      %vm268 = vcmp.lt.s32.totalorder %v267, 8
      %v269 = vsel %vm268, %v265, 0.0
      %v270 = vsel %vm247, %v269, 0.0
      %271 = vadd.xlane.f32.xlu0 %v270
      %v272 = vpop.xlane.xlu0 %271
      %v273 = vrot.slane %v272, 4
      %v274 = vadd.f32 %v272, %v273
      %v275 = vrot.slane %v274, 2
      %v276 = vadd.f32 %v274, %v275
      %v277 = vrot.slane %v276, 1
      %v278 = vadd.f32 %v276, %v277
      %s279 = vtos %v278
      %s280 = smul.f32 %s279, 0.125
      %v281 = vstv %s280
      %vm282 = vcmask 0
      %283 = vst.msk [vmem:[#allocation10] sm:$0x1] %vm282, %v281
    $region25: #{tpu_custom_call.1} parent=1 // pred_fallthru
      _
    // Predicated region
    $region26: #{tpu_custom_call.1} parent=1 // pred_check
      _
    $region27: #{tpu_custom_call.1} parent=1 // pred_check_branch
      %285 = sbr.rel (0) target = $region29
    $region28: #{tpu_custom_call.1} parent=1 // pred_region
      %s287 = ssub.s32 128, 128
      %288 = vsyncadd [#allocation8], %s287
      %s290 = sshll.u32 [#allocation9], 4
      %s291 = int_to_ptr.vmem [resolvable:$true] %s290
      %293 = dma.vmem_to_hbm [thread:$0]  %s291, 128, %s3, [#allocation8]
    $region29: #{tpu_custom_call.1} parent=1 // pred_fallthru
      _
    // Predicated region
    $region30: #{tpu_custom_call.1} parent=1 // pred_check
      _
    $region31: #{tpu_custom_call.1} parent=1 // pred_check_branch
      %295 = sbr.rel (0) target = $region33
    $region32: #{tpu_custom_call.1} parent=1 // pred_region
      %s297 = ssub.s32 16, 16
      %298 = vsyncadd [#allocation11], %s297
      %s300 = sshll.u32 [#allocation10], 4
      %s301 = int_to_ptr.vmem [resolvable:$true] %s300
      %303 = dma.vmem_to_hbm [thread:$0]  %s301, 16, %s4, [#allocation11]
    $region33: #{tpu_custom_call.1} parent=1 // pred_fallthru
      _
    // Predicated region
    $region34: #{tpu_custom_call.1} parent=1 // pred_check
      _
    $region35: #{tpu_custom_call.1} parent=1 // pred_check_branch
      %305 = sbr.rel (0) target = $region37
    $region36: #{tpu_custom_call.1} parent=1 // pred_region
      %306 = dma.done [#allocation8], 128
    $region37: #{tpu_custom_call.1} parent=1 // pred_fallthru
      _
    // Predicated region
    $region38: #{tpu_custom_call.1} parent=1 // pred_check
      _
    $region39: #{tpu_custom_call.1} parent=1 // pred_check_branch
      %308 = sbr.rel (0) target = $region41
    $region40: #{tpu_custom_call.1} parent=1 // pred_region
      %309 = dma.done [#allocation11], 16
    $region41: #{tpu_custom_call.1} parent=1 // pred_fallthru
      _
    %310 = vsyncpa [#allocation7], 1
    %311 = vsyncpa [#allocation8], 1
    %312 = vsyncpa [#allocation11], 1

</llo_original>
